<compile_context>
chip_gen: v7x
topology: tpu7x:2x2x1
jax: 0.10.0
libtpu: 0.0.40
codegen_flags: <defaults>
</compile_context>

<pallas_src>
import functools

import jax
import jax.numpy as jnp
from jax.experimental import pallas as pl
from jax.experimental.pallas import tpu as pltpu

_IW_PAD = 1e30    # padded input-weight columns: huge but finite -> never the argmin,
                  # and finite so iw_pad * 0 == 0 exactly in the final matmul
_W_PAD = -1e30    # padded visible_ws columns: softmax weight underflows to exactly 0


def _round_up(x, m):
    return -(-x // m) * m


def scn_kernel(depth, Dinp, Dout, mxu_dtype, approx_softmax_recip,
               inp_ref, hf0_ref, vws_ref, bw_ref, bb_ref,
               out_ref, dh_scr, df_scr):
    """One batch tile of the SCN_multi_justified forward pass.

    Rank-1 delta bookkeeping: the shared bases [H0 | F0] stay resident once; per
    visible position we track the *last* depth step that overwrote it (`owner`) and
    that step's delta against the base row (dh_scr / df_scr).  Every contraction
    against h / f is one dense (TB, Vp) x (Vp, Dinp+Doutp) MXU matmul plus O(depth)
    cheap masked-reduce corrections.
    """
    TB, Vp = inp_ref.shape
    Doutp = out_ref.shape[1]
    f32 = jnp.float32

    # Unwritten delta slots must contribute exactly 0 (never stale/garbage VMEM).
    dh_scr[...] = jnp.zeros(dh_scr.shape, f32)
    df_scr[...] = jnp.zeros(df_scr.shape, f32)

    HF0 = hf0_ref[...]                          # (Vp, Dinp + Doutp) = [H0 | F0], padded
    HF0_m = HF0.astype(mxu_dtype)               # hoisted MXU-operand cast

    col = jax.lax.broadcasted_iota(jnp.int32, (TB, Vp), 1)
    is_wcol = jax.lax.broadcasted_iota(jnp.int32, (TB, Doutp), 1) == Dout

    iw0 = inp_ref[...]                                      # (TB, Vp)
    w0 = jnp.broadcast_to(vws_ref[...], (TB, Vp))           # (TB, Vp)
    owner0 = jnp.full((TB, Vp), -1, jnp.int32)              # -1 == "still the base row"

    def depth_step(i, carry):
        iw, w, owner = carry

        # --- softmax over visible units (f32; feeds the argmin path) ------------
        wmax = jnp.max(w, axis=-1, keepdims=True)
        e = jnp.exp(w - wmax)
        den = jnp.sum(e, axis=-1, keepdims=True)
        if approx_softmax_recip:
            sm = e * pl.reciprocal(den, approx=True)        # EUP offload (optional)
        else:
            sm = e / den
        # Exact division: an approximate reciprocal here can flip the argmin on
        # near-ties and the scatter semantics then diverge from the reference.
        wd = iw / (sm + 1e-20)

        # --- min / first-argmin over V ------------------------------------------
        values = jnp.min(wd, axis=-1, keepdims=True)                          # (TB, 1)
        idx = jnp.min(jnp.where(wd == values, col, Vp), axis=-1, keepdims=True)
        onehot = col == idx                                                   # (TB, Vp)
        onehot_f = onehot.astype(f32)

        # --- input-weights update -------------------------------------------------
        iw = iw - values * sm
        iw = jnp.where(onehot, jnp.broadcast_to(values, (TB, Vp)), iw)

        # --- fused [H | F] base matmuls (2 MXU dispatches per step) ----------------
        hf = jnp.dot(sm.astype(mxu_dtype), HF0_m, preferred_element_type=f32)
        g = jnp.dot(onehot_f.astype(mxu_dtype), HF0_m, preferred_element_type=f32)

        # --- rank-1 corrections: owner == last-writer step per position -----------
        def corr_body(t, c):
            ch, cf = c
            sel = jnp.sum(jnp.where(owner == t, sm, 0.0), axis=-1, keepdims=True)
            return ch + sel * dh_scr[t], cf + sel * df_scr[t]
        corr_h, corr_f = jax.lax.fori_loop(
            0, depth, corr_body,
            (jnp.zeros((TB, Dinp), f32), jnp.zeros((TB, Doutp), f32)))

        new_h = hf[:, :Dinp] + corr_h                 # (TB, Dinp)
        f_avg = hf[:, Dinp:] + corr_f                 # (TB, Doutp); column Dout == 0

        # --- bias_funcs[i] (+ the L[i] head folded into padded column `Dout`) ------
        bw_i = bw_ref[i].astype(mxu_dtype)            # (Dinp, Doutp)
        new_f = (f_avg
                 + jnp.dot(new_h.astype(mxu_dtype), bw_i, preferred_element_type=f32)
                 + bb_ref[pl.ds(i, 1), :])            # (TB, Doutp)
        new_w = new_f[:, Dout:Dout + 1]               # (TB, 1) == L[i](new_h)

        # --- record deltas vs the base rows gathered via the one-hot matmul --------
        dh_scr[i] = new_h - g[:, :Dinp]
        df_scr[i] = jnp.where(is_wcol, 0.0, new_f - g[:, Dinp:])

        # --- scatter: owner / w -----------------------------------------------------
        owner = jnp.where(onehot, i, owner)
        w = jnp.where(onehot, jnp.broadcast_to(new_w, (TB, Vp)), w)
        return iw, w, owner

    iw, _, owner = jax.lax.fori_loop(0, depth, depth_step, (iw0, w0, owner0))

    # out = iw @ f = iw @ [H0|F0] (F part) + sum_t (iw restricted to owner==t) * df_t
    out = jnp.dot(iw.astype(mxu_dtype), HF0_m, preferred_element_type=f32)[:, Dinp:]

    def out_corr(t, o):
        sel = jnp.sum(jnp.where(owner == t, iw, 0.0), axis=-1, keepdims=True)
        return o + sel * df_scr[t]
    out_ref[...] = jax.lax.fori_loop(0, depth, out_corr, out)


def _pick_batch_tile(B, Vp, Dinp, Doutp, depth, budget_bytes):
    """Largest batch tile whose live state fits the VMEM budget, preferring >= 2
    grid steps so the "parallel" batch axis can shard across TensorCores (v7x)."""
    def live_bytes(tb):
        work = 10 * tb * Vp * 4                       # iw/w/owner/sm/e/wd/col + temps
        deltas = depth * tb * (Dinp + Doutp) * 4      # stacked dh/df scratch
        io = 2 * tb * (Vp + Doutp) * 4                # double-buffered in/out tiles
        return work + deltas + io

    cands = [t for t in (256, 128, 64, 32, 16, 8) if B % t == 0]
    if not cands:
        return B                                      # tiny / odd batch: one block
    pref = [t for t in cands if 2 * t <= B] or cands
    for t in pref:
        if live_bytes(t) <= budget_bytes:
            return t
    return pref[-1]


def scn_multi_justified_forward(inp, visible_units, visible_fs, visible_ws,
                                L_w, L_b, Bf_wT, Bf_b, *,
                                batch_tile=None,
                                mxu_dtype=jnp.float32,
                                approx_softmax_recip=False,
                                single_buffer_params=None):
    """Forward pass of SCN_multi_justified. Returns (out, hidden_collect, None)."""
    f32 = jnp.float32
    inp = jnp.asarray(inp, f32)
    visible_units = jnp.asarray(visible_units, f32)
    visible_fs = jnp.asarray(visible_fs, f32)
    visible_ws = jnp.asarray(visible_ws, f32).reshape(-1)
    L_w = jnp.asarray(L_w, f32)
    L_b = jnp.asarray(L_b, f32)
    Bf_wT = jnp.asarray(Bf_wT, f32)
    Bf_b = jnp.asarray(Bf_b, f32)

    B, V = inp.shape
    Din = visible_units.shape[1]
    Dout = visible_fs.shape[1]
    depth = L_w.shape[0]

    # Lane-dense padding: V (lane dim of every VPU/XLU op and contraction dim of the
    # main matmuls), Din and Dout all padded to 128 multiples.  Dout gets at least one
    # guaranteed-free column so the L[i] head rides inside the bias_funcs matmul.
    Vp = _round_up(V, 128)
    Dinp = _round_up(Din, 128)
    Doutp = _round_up(Dout + 1, 128)

    inp_p = jnp.pad(inp, ((0, 0), (0, Vp - V)), constant_values=_IW_PAD)
    H0p = jnp.zeros((Vp, Dinp), f32).at[:V, :Din].set(visible_units)
    F0p = jnp.zeros((Vp, Doutp), f32).at[:V, :Dout].set(visible_fs)
    HF0 = jnp.concatenate([H0p, F0p], axis=1)                    # (Vp, Dinp + Doutp)
    vws_p = jnp.full((1, Vp), _W_PAD, f32).at[0, :V].set(visible_ws)
    bw_p = (jnp.zeros((depth, Dinp, Doutp), f32)
            .at[:, :Din, :Dout].set(Bf_wT)
            .at[:, :Din, Dout].set(L_w))                         # column Dout = L_w[i]
    bb_p = (jnp.zeros((depth, Doutp), f32)
            .at[:, :Dout].set(Bf_b)
            .at[:, Dout].set(L_b[:, 0]))                         # column Dout = L_b[i]

    try:
        vmem_cap = int(pltpu.get_tpu_info().vmem_capacity_bytes)
    except Exception:
        vmem_cap = 64 << 20                                      # v7x per-TC floor
    vmem_limit = int(min(vmem_cap * 3 // 4, 100 << 20))

    param_bytes = 4 * (HF0.size + vws_p.size + bw_p.size + bb_p.size)
    if single_buffer_params is None:
        # Only worth single-buffering when the resident parameters are big
        # (v7x 64 MiB budget); otherwise keep the default pipeline behaviour.
        single_buffer_params = 2 * param_bytes > vmem_limit // 4
    resident = param_bytes * (1 if single_buffer_params else 2)
    budget = max(vmem_limit - resident, vmem_limit // 4)

    TB = batch_tile if batch_tile is not None else _pick_batch_tile(
        B, Vp, Dinp, Doutp, depth, budget)
    assert B % TB == 0, (B, TB)
    grid = (B // TB,)

    def _const_spec(shape):
        ndim = len(shape)
        index_map = lambda i: (0,) * ndim
        if single_buffer_params:
            # Constant-index params don't need double buffering (halves their VMEM).
            return pl.BlockSpec(shape, index_map, pipeline_mode=pl.Buffered(1))
        return pl.BlockSpec(shape, index_map)

    # TODO(synk): for very large depth*Dinp*Doutp, stream bw_p[i] manually
    # (memory_space=pl.ANY + make_async_copy double buffer) instead of keeping the
    # whole stack VMEM-resident.

    kernel = functools.partial(scn_kernel, depth, Dinp, Dout,
                               mxu_dtype, approx_softmax_recip)
    out_p = pl.pallas_call(
        kernel,
        out_shape=jax.ShapeDtypeStruct((B, Doutp), f32),
        grid=grid,
        in_specs=[
            pl.BlockSpec((TB, Vp), lambda i: (i, 0)),            # inp: batch tiled
            _const_spec((Vp, Dinp + Doutp)),                     # [H0 | F0]
            _const_spec((1, Vp)),                                # visible_ws
            _const_spec((depth, Dinp, Doutp)),                   # bias_funcs W^T (+L_w col)
            _const_spec((depth, Doutp)),                         # bias_funcs b   (+L_b col)
        ],
        out_specs=pl.BlockSpec((TB, Doutp), lambda i: (i, 0)),   # lane-dense output
        scratch_shapes=[
            pltpu.VMEM((depth, TB, Dinp), f32),                  # dh: new_h - H0[idx]
            pltpu.VMEM((depth, TB, Doutp), f32),                 # df: new_f - F0[idx]
        ],
        compiler_params=pltpu.CompilerParams(
            dimension_semantics=("parallel",),
            vmem_limit_bytes=vmem_limit),
    )(inp_p, HF0, vws_p, bw_p, bb_p)

    out = out_p[:, :Dout].reshape(B, 1, Dout)
    # matches torch return: (out, hidden_collect, None)
    return out, [], None


def scn_reference(inp, visible_units, visible_fs, visible_ws, L_w, L_b, Bf_wT, Bf_b):
    """Pure-JAX mirror of the PyTorch forward (full-precision), for verification."""
    hi = jax.lax.Precision.HIGHEST
    B, V = inp.shape
    depth = L_w.shape[0]
    f = jnp.broadcast_to(visible_fs[None], (B,) + visible_fs.shape)
    h = jnp.broadcast_to(visible_units[None], (B,) + visible_units.shape)
    w = jnp.broadcast_to(visible_ws[None], (B, V))
    iw = inp
    for i in range(depth):
        sm = jax.nn.softmax(w, axis=-1)
        wd = iw / (sm + 1e-20)
        values = jnp.min(wd, axis=1)
        indices = jnp.argmin(wd, axis=1)
        iw = iw - values[:, None] * sm
        iw = iw.at[jnp.arange(B), indices].set(values)
        new_h = jnp.einsum('bv,bvd->bd', sm, h, precision=hi)
        new_f = (jnp.einsum('bv,bvd->bd', sm, f, precision=hi)
                 + jnp.matmul(new_h, Bf_wT[i], precision=hi) + Bf_b[i])
        f = f.at[jnp.arange(B), indices].set(new_f)
        h = h.at[jnp.arange(B), indices].set(new_h)
        new_w = jnp.matmul(new_h, L_w[i], precision=hi) + L_b[i, 0]
        w = w.at[jnp.arange(B), indices].set(new_w)
    out = jnp.einsum('bv,bvd->bd', iw, f, precision=hi)
    return out.reshape(B, 1, -1)


def _make_inputs(key, B, V, Din, Dout, depth, *, random_state=False):
    ks = jax.random.split(key, 8)
    inp = jax.random.uniform(ks[0], (B, V), jnp.float32)
    visible_units = jax.random.normal(ks[1], (V, Din), jnp.float32)
    bound = 1.0 / (Din ** 0.5)
    L_w = jax.random.uniform(ks[2], (depth, Din), jnp.float32, -bound, bound)
    L_b = jax.random.uniform(ks[3], (depth, 1), jnp.float32, -bound, bound)
    Bf_b = jax.random.uniform(ks[4], (depth, Dout), jnp.float32, -bound, bound)
    if random_state:
        # exercises the F0 contraction, the bias_funcs matmul and the df bookkeeping
        visible_fs = jax.random.normal(ks[5], (V, Dout), jnp.float32)
        visible_ws = 0.5 * jax.random.normal(ks[6], (V,), jnp.float32)
        Bf_wT = 0.1 * jax.random.normal(ks[7], (depth, Din, Dout), jnp.float32)
    else:
        # __init__ semantics: visible_fs / visible_ws / bias_funcs weights start at 0
        visible_fs = jnp.zeros((V, Dout), jnp.float32)
        visible_ws = jnp.zeros((V,), jnp.float32)
        Bf_wT = jnp.zeros((depth, Din, Dout), jnp.float32)
    return inp, visible_units, visible_fs, visible_ws, L_w, L_b, Bf_wT, Bf_b


if __name__ == "__main__":
    configs = [
        # (B, V, Din, Dout, depth, batch_tile, random_state)
        (2, 8, 16, 8, 4, None, False),    # __init__-style zeros, single-block path
        (16, 16, 32, 16, 3, None, True),  # nonzero fs/ws/Bf_w, batch grid=(2,)
        (8, 24, 16, 8, 5, 8, True),       # explicit batch_tile, deeper loop
    ]
    key = jax.random.PRNGKey(0)
    for cfg, k in zip(configs, jax.random.split(key, len(configs))):
        B, V, Din, Dout, depth, bt, rnd = cfg
        args = _make_inputs(k, B, V, Din, Dout, depth, random_state=rnd)
        out, hidden_collect, _ = scn_multi_justified_forward(*args, batch_tile=bt)
        out = jax.block_until_ready(out)

        ref = scn_reference(*args)
        assert out.shape == (B, 1, Dout), (out.shape, (B, 1, Dout))
        max_diff = float(jnp.max(jnp.abs(out - ref)))
        assert bool(jnp.allclose(out, ref, atol=2e-3, rtol=2e-3)), \
            f"mismatch vs reference {cfg}: max abs diff {max_diff}"

    print("KERNEL_OK")
</pallas_src>

<mosaic_0001>
module attributes {stable_mosaic.version = 11 : i64} {
  func.func @scn_kernel(%arg0: i32, %arg1: memref<2x128xf32, #tpu.memory_space<vmem>>, %arg2: memref<128x256xf32, #tpu.memory_space<vmem>>, %arg3: memref<1x128xf32, #tpu.memory_space<vmem>>, %arg4: memref<4x128x128xf32, #tpu.memory_space<vmem>>, %arg5: memref<4x128xf32, #tpu.memory_space<vmem>>, %arg6: memref<2x128xf32, #tpu.memory_space<vmem>>, %arg7: memref<4x2x128xf32, #tpu.memory_space<vmem>>, %arg8: memref<4x2x128xf32, #tpu.memory_space<vmem>>) attributes {dimension_semantics = [#tpu.dimension_semantics<parallel>], iteration_bounds = array<i64: 1>, scalar_prefetch = 0 : i64, scratch_operands = 2 : i64, tpu.core_type = #tpu.core_type<tc>, window_params = [{transform_indices = @transform_0, window_bounds = array<i64: 2, 128>}, {pipeline_mode = #tpu.pipeline_mode<synchronous>, transform_indices = @transform_1, window_bounds = array<i64: 128, 256>}, {pipeline_mode = #tpu.pipeline_mode<synchronous>, transform_indices = @transform_2, window_bounds = array<i64: 1, 128>}, {pipeline_mode = #tpu.pipeline_mode<synchronous>, transform_indices = @transform_3, window_bounds = array<i64: 4, 128, 128>}, {pipeline_mode = #tpu.pipeline_mode<synchronous>, transform_indices = @transform_4, window_bounds = array<i64: 4, 128>}, {transform_indices = @transform_5, window_bounds = array<i64: 2, 128>}]} {
    %cst = arith.constant 0.000000e+00 : f32
    %0 = vector.broadcast %cst : f32 to vector<4x2x128xf32>
    %c0 = arith.constant 0 : index
    %c0_0 = arith.constant 0 : index
    %c0_1 = arith.constant 0 : index
    %1 = vector.load %arg7[%c0, %c0_0, %c0_1] : memref<4x2x128xf32, #tpu.memory_space<vmem>>, vector<4x2x128xf32>
    tpu.vector_store %arg7[%c0, %c0_0, %c0_1], %0 {strides = array<i32>} : memref<4x2x128xf32, #tpu.memory_space<vmem>>, vector<4x2x128xf32>,
    %cst_2 = arith.constant 0.000000e+00 : f32
    %2 = vector.broadcast %cst_2 : f32 to vector<4x2x128xf32>
    %c0_3 = arith.constant 0 : index
    %c0_4 = arith.constant 0 : index
    %c0_5 = arith.constant 0 : index
    %3 = vector.load %arg8[%c0_3, %c0_4, %c0_5] : memref<4x2x128xf32, #tpu.memory_space<vmem>>, vector<4x2x128xf32>
    tpu.vector_store %arg8[%c0_3, %c0_4, %c0_5], %2 {strides = array<i32>} : memref<4x2x128xf32, #tpu.memory_space<vmem>>, vector<4x2x128xf32>,
    %c0_6 = arith.constant 0 : index
    %c0_7 = arith.constant 0 : index
    %4 = vector.load %arg2[%c0_6, %c0_7] : memref<128x256xf32, #tpu.memory_space<vmem>>, vector<128x256xf32>
    %5 = tpu.iota {dimensions = array<i32: 1>} : vector<2x128xi32>
    %6 = tpu.iota {dimensions = array<i32: 1>} : vector<2x128xi32>
    %c8_i32 = arith.constant 8 : i32
    %7 = vector.broadcast %c8_i32 : i32 to vector<2x128xi32>
    %8 = arith.cmpi eq, %6, %7 : vector<2x128xi32>
    %c0_8 = arith.constant 0 : index
    %c0_9 = arith.constant 0 : index
    %9 = vector.load %arg1[%c0_8, %c0_9] : memref<2x128xf32, #tpu.memory_space<vmem>>, vector<2x128xf32>
    %c0_10 = arith.constant 0 : index
    %c0_11 = arith.constant 0 : index
    %10 = vector.load %arg3[%c0_10, %c0_11] : memref<1x128xf32, #tpu.memory_space<vmem>>, vector<1x128xf32>
    %11 = vector.shape_cast %10 : vector<1x128xf32> to vector<1x128xf32>
    %12 = vector.broadcast %11 : vector<1x128xf32> to vector<2x128xf32>
    %c-1_i32 = arith.constant -1 : i32
    %13 = vector.broadcast %c-1_i32 : i32 to vector<2x128xi32>
    %c0_i32 = arith.constant 0 : i32
    %c4_i32 = arith.constant 4 : i32
    %14 = arith.addi %c0_i32, %c4_i32 : i32
    %c1_i32 = arith.constant 1 : i32
    %15:3 = scf.for %arg9 = %c0_i32 to %14 step %c1_i32 iter_args(%arg10 = %9, %arg11 = %12, %arg12 = %13) -> (vector<2x128xf32>, vector<2x128xf32>, vector<2x128xi32>)  : i32 {
      %cst_20 = arith.constant dense<0xFF800000> : vector<2xf32>
      %21 = vector.multi_reduction <maximumf>, %arg11, %cst_20 [1] : vector<2x128xf32> to vector<2xf32>
      %22 = vector.shape_cast %21 : vector<2xf32> to vector<2x1xf32>
      %23 = vector.broadcast %22 : vector<2x1xf32> to vector<2x128xf32>
      %24 = arith.subf %arg11, %23 : vector<2x128xf32>
      %25 = math.exp %24 : vector<2x128xf32>
      %cst_21 = arith.constant dense<0.000000e+00> : vector<2xf32>
      %26 = vector.multi_reduction <add>, %25, %cst_21 [1] : vector<2x128xf32> to vector<2xf32>
      %27 = vector.shape_cast %26 : vector<2xf32> to vector<2x1xf32>
      %28 = vector.broadcast %27 : vector<2x1xf32> to vector<2x128xf32>
      %29 = arith.divf %25, %28 : vector<2x128xf32>
      %cst_22 = arith.constant 9.99999968E-21 : f32
      %30 = vector.broadcast %cst_22 : f32 to vector<2x128xf32>
      %31 = arith.addf %29, %30 : vector<2x128xf32>
      %32 = arith.divf %arg10, %31 : vector<2x128xf32>
      %cst_23 = arith.constant dense<0x7F800000> : vector<2xf32>
      %33 = vector.multi_reduction <minimumf>, %32, %cst_23 [1] : vector<2x128xf32> to vector<2xf32>
      %34 = vector.shape_cast %33 : vector<2xf32> to vector<2x1xf32>
      %35 = vector.broadcast %34 : vector<2x1xf32> to vector<2x128xf32>
      %36 = arith.cmpf oeq, %32, %35 : vector<2x128xf32>
      %c128_i32 = arith.constant 128 : i32
      %37 = vector.broadcast %c128_i32 : i32 to vector<2x128xi32>
      %38 = arith.select %36, %5, %37 : vector<2x128xi1>, vector<2x128xi32>
      %cst_24 = arith.constant dense<2147483647> : vector<2xi32>
      %39 = vector.multi_reduction <minsi>, %38, %cst_24 [1] : vector<2x128xi32> to vector<2xi32>
      %40 = vector.shape_cast %39 : vector<2xi32> to vector<2x1xi32>
      %41 = vector.broadcast %40 : vector<2x1xi32> to vector<2x128xi32>
      %42 = arith.cmpi eq, %5, %41 : vector<2x128xi32>
      %43 = arith.extui %42 : vector<2x128xi1> to vector<2x128xi32>
      %44 = arith.sitofp %43 : vector<2x128xi32> to vector<2x128xf32>
      %45 = vector.broadcast %34 : vector<2x1xf32> to vector<2x128xf32>
      %46 = arith.mulf %45, %29 : vector<2x128xf32>
      %47 = arith.subf %arg10, %46 : vector<2x128xf32>
      %48 = vector.shape_cast %34 : vector<2x1xf32> to vector<2x1xf32>
      %49 = vector.broadcast %48 : vector<2x1xf32> to vector<2x128xf32>
      %50 = arith.select %42, %49, %47 : vector<2x128xi1>, vector<2x128xf32>
      %cst_25 = arith.constant dense<0.000000e+00> : vector<2x256xf32>
      %51 = tpu.matmul %29, %4, %cst_25 {dimension_numbers = #tpu.dot_dimension_numbers<[1], [0], [0], [1], [0, 0, 1, 1], [], []>} : vector<2x128xf32>, vector<128x256xf32>, vector<2x256xf32> -> vector<2x256xf32>
      %cst_26 = arith.constant dense<0.000000e+00> : vector<2x256xf32>
      %52 = tpu.matmul %44, %4, %cst_26 {dimension_numbers = #tpu.dot_dimension_numbers<[1], [0], [0], [1], [0, 0, 1, 1], [], []>} : vector<2x128xf32>, vector<128x256xf32>, vector<2x256xf32> -> vector<2x256xf32>
      %cst_27 = arith.constant 0.000000e+00 : f32
      %53 = vector.broadcast %cst_27 : f32 to vector<2x128xf32>
      %cst_28 = arith.constant 0.000000e+00 : f32
      %54 = vector.broadcast %cst_28 : f32 to vector<2x128xf32>
      %c0_i32_29 = arith.constant 0 : i32
      %c4_i32_30 = arith.constant 4 : i32
      %55 = arith.addi %c0_i32_29, %c4_i32_30 : i32
      %c1_i32_31 = arith.constant 1 : i32
      %56:2 = scf.for %arg13 = %c0_i32_29 to %55 step %c1_i32_31 iter_args(%arg14 = %53, %arg15 = %54) -> (vector<2x128xf32>, vector<2x128xf32>)  : i32 {
        %90 = vector.broadcast %arg13 : i32 to vector<2x128xi32>
        %91 = arith.cmpi eq, %arg12, %90 : vector<2x128xi32>
        %cst_42 = arith.constant 0.000000e+00 : f32
        %92 = vector.broadcast %cst_42 : f32 to vector<2x128xf32>
        %93 = arith.select %91, %29, %92 : vector<2x128xi1>, vector<2x128xf32>
        %cst_43 = arith.constant dense<0.000000e+00> : vector<2xf32>
        %94 = vector.multi_reduction <add>, %93, %cst_43 [1] : vector<2x128xf32> to vector<2xf32>
        %95 = vector.shape_cast %94 : vector<2xf32> to vector<2x1xf32>
        %96 = arith.index_cast %arg13 : i32 to index
        %c0_44 = arith.constant 0 : index
        %c0_45 = arith.constant 0 : index
        %97 = vector.load %arg7[%96, %c0_44, %c0_45] : memref<4x2x128xf32, #tpu.memory_space<vmem>>, vector<1x2x128xf32>
        %98 = vector.shape_cast %97 : vector<1x2x128xf32> to vector<2x128xf32>
        %99 = vector.broadcast %95 : vector<2x1xf32> to vector<2x128xf32>
        %100 = arith.mulf %99, %98 : vector<2x128xf32>
        %101 = arith.addf %arg14, %100 : vector<2x128xf32>
        %102 = arith.index_cast %arg13 : i32 to index
        %c0_46 = arith.constant 0 : index
        %c0_47 = arith.constant 0 : index
        %103 = vector.load %arg8[%102, %c0_46, %c0_47] : memref<4x2x128xf32, #tpu.memory_space<vmem>>, vector<1x2x128xf32>
        %104 = vector.shape_cast %103 : vector<1x2x128xf32> to vector<2x128xf32>
        %105 = vector.broadcast %95 : vector<2x1xf32> to vector<2x128xf32>
        %106 = arith.mulf %105, %104 : vector<2x128xf32>
        %107 = arith.addf %arg15, %106 : vector<2x128xf32>
        scf.yield %101, %107 : vector<2x128xf32>, vector<2x128xf32>
      }
      %c4_i32_32 = arith.constant 4 : i32
      %57 = vector.extract_strided_slice %51 {offsets = [0, 0], sizes = [2, 128], strides = [1, 1]} : vector<2x256xf32> to vector<2x128xf32>
      %58 = arith.addf %57, %56#0 : vector<2x128xf32>
      %59 = vector.extract_strided_slice %51 {offsets = [0, 128], sizes = [2, 128], strides = [1, 1]} : vector<2x256xf32> to vector<2x128xf32>
      %60 = arith.addf %59, %56#1 : vector<2x128xf32>
      %61 = arith.index_cast %arg9 : i32 to index
      %c0_33 = arith.constant 0 : index
      %c0_34 = arith.constant 0 : index
      %62 = vector.load %arg4[%61, %c0_33, %c0_34] : memref<4x128x128xf32, #tpu.memory_space<vmem>>, vector<1x128x128xf32>
      %63 = vector.shape_cast %62 : vector<1x128x128xf32> to vector<128x128xf32>
      %cst_35 = arith.constant dense<0.000000e+00> : vector<2x128xf32>
      %64 = tpu.matmul %58, %63, %cst_35 {dimension_numbers = #tpu.dot_dimension_numbers<[1], [0], [0], [1], [0, 0, 1, 1], [], []>} : vector<2x128xf32>, vector<128x128xf32>, vector<2x128xf32> -> vector<2x128xf32>
      %65 = arith.addf %60, %64 : vector<2x128xf32>
      %66 = arith.index_cast %arg9 : i32 to index
      %c0_36 = arith.constant 0 : index
      %67 = vector.load %arg5[%66, %c0_36] : memref<4x128xf32, #tpu.memory_space<vmem>>, vector<1x128xf32>
      %68 = vector.broadcast %67 : vector<1x128xf32> to vector<2x128xf32>
      %69 = arith.addf %65, %68 : vector<2x128xf32>
      %70 = vector.extract_strided_slice %69 {offsets = [0, 8], sizes = [2, 1], strides = [1, 1]} : vector<2x128xf32> to vector<2x1xf32>
      %71 = vector.extract_strided_slice %52 {offsets = [0, 0], sizes = [2, 128], strides = [1, 1]} : vector<2x256xf32> to vector<2x128xf32>
      %72 = arith.subf %58, %71 : vector<2x128xf32>
      %73 = arith.index_cast %arg9 : i32 to index
      %c0_37 = arith.constant 0 : index
      %c0_38 = arith.constant 0 : index
      %74 = vector.load %arg7[%73, %c0_37, %c0_38] : memref<4x2x128xf32, #tpu.memory_space<vmem>>, vector<1x2x128xf32>
      %75 = vector.shape_cast %74 : vector<1x2x128xf32> to vector<2x128xf32>
      %76 = vector.shape_cast %72 : vector<2x128xf32> to vector<1x2x128xf32>
      tpu.vector_store %arg7[%73, %c0_37, %c0_38], %76 {strides = array<i32>} : memref<4x2x128xf32, #tpu.memory_space<vmem>>, vector<1x2x128xf32>,
      %77 = vector.extract_strided_slice %52 {offsets = [0, 128], sizes = [2, 128], strides = [1, 1]} : vector<2x256xf32> to vector<2x128xf32>
      %78 = arith.subf %69, %77 : vector<2x128xf32>
      %cst_39 = arith.constant 0.000000e+00 : f32
      %79 = vector.broadcast %cst_39 : f32 to vector<2x128xf32>
      %80 = arith.select %8, %79, %78 : vector<2x128xi1>, vector<2x128xf32>
      %81 = arith.index_cast %arg9 : i32 to index
      %c0_40 = arith.constant 0 : index
      %c0_41 = arith.constant 0 : index
      %82 = vector.load %arg8[%81, %c0_40, %c0_41] : memref<4x2x128xf32, #tpu.memory_space<vmem>>, vector<1x2x128xf32>
      %83 = vector.shape_cast %82 : vector<1x2x128xf32> to vector<2x128xf32>
      %84 = vector.shape_cast %80 : vector<2x128xf32> to vector<1x2x128xf32>
      tpu.vector_store %arg8[%81, %c0_40, %c0_41], %84 {strides = array<i32>} : memref<4x2x128xf32, #tpu.memory_space<vmem>>, vector<1x2x128xf32>,
      %85 = vector.broadcast %arg9 : i32 to vector<2x128xi32>
      %86 = arith.select %42, %85, %arg12 : vector<2x128xi1>, vector<2x128xi32>
      %87 = vector.shape_cast %70 : vector<2x1xf32> to vector<2x1xf32>
      %88 = vector.broadcast %87 : vector<2x1xf32> to vector<2x128xf32>
      %89 = arith.select %42, %88, %arg11 : vector<2x128xi1>, vector<2x128xf32>
      scf.yield %50, %89, %86 : vector<2x128xf32>, vector<2x128xf32>, vector<2x128xi32>
    }
    %c4_i32_12 = arith.constant 4 : i32
    %cst_13 = arith.constant dense<0.000000e+00> : vector<2x256xf32>
    %16 = tpu.matmul %15#0, %4, %cst_13 {dimension_numbers = #tpu.dot_dimension_numbers<[1], [0], [0], [1], [0, 0, 1, 1], [], []>} : vector<2x128xf32>, vector<128x256xf32>, vector<2x256xf32> -> vector<2x256xf32>
    %17 = vector.extract_strided_slice %16 {offsets = [0, 128], sizes = [2, 128], strides = [1, 1]} : vector<2x256xf32> to vector<2x128xf32>
    %c0_i32_14 = arith.constant 0 : i32
    %c4_i32_15 = arith.constant 4 : i32
    %18 = arith.addi %c0_i32_14, %c4_i32_15 : i32
    %c1_i32_16 = arith.constant 1 : i32
    %19 = scf.for %arg9 = %c0_i32_14 to %18 step %c1_i32_16 iter_args(%arg10 = %17) -> (vector<2x128xf32>)  : i32 {
      %21 = vector.broadcast %arg9 : i32 to vector<2x128xi32>
      %22 = arith.cmpi eq, %15#2, %21 : vector<2x128xi32>
      %cst_20 = arith.constant 0.000000e+00 : f32
      %23 = vector.broadcast %cst_20 : f32 to vector<2x128xf32>
      %24 = arith.select %22, %15#0, %23 : vector<2x128xi1>, vector<2x128xf32>
      %cst_21 = arith.constant dense<0.000000e+00> : vector<2xf32>
      %25 = vector.multi_reduction <add>, %24, %cst_21 [1] : vector<2x128xf32> to vector<2xf32>
      %26 = vector.shape_cast %25 : vector<2xf32> to vector<2x1xf32>
      %27 = arith.index_cast %arg9 : i32 to index
      %c0_22 = arith.constant 0 : index
      %c0_23 = arith.constant 0 : index
      %28 = vector.load %arg8[%27, %c0_22, %c0_23] : memref<4x2x128xf32, #tpu.memory_space<vmem>>, vector<1x2x128xf32>
      %29 = vector.shape_cast %28 : vector<1x2x128xf32> to vector<2x128xf32>
      %30 = vector.broadcast %26 : vector<2x1xf32> to vector<2x128xf32>
      %31 = arith.mulf %30, %29 : vector<2x128xf32>
      %32 = arith.addf %arg10, %31 : vector<2x128xf32>
      scf.yield %32 : vector<2x128xf32>
    }
    %c4_i32_17 = arith.constant 4 : i32
    %c0_18 = arith.constant 0 : index
    %c0_19 = arith.constant 0 : index
    %20 = vector.load %arg6[%c0_18, %c0_19] : memref<2x128xf32, #tpu.memory_space<vmem>>, vector<2x128xf32>
    tpu.vector_store %arg6[%c0_18, %c0_19], %19 {strides = array<i32>} : memref<2x128xf32, #tpu.memory_space<vmem>>, vector<2x128xf32>,
    return
  }
  func.func @transform_0(%arg0: i32) -> (i32, i32) {
    %c0_i32 = arith.constant 0 : i32
    %c0_i32_0 = arith.constant 0 : i32
    return %arg0, %c0_i32 : i32, i32
  }
  func.func @transform_1(%arg0: i32) -> (i32, i32) {
    %c0_i32 = arith.constant 0 : i32
    %c0_i32_0 = arith.constant 0 : i32
    %c0_i32_1 = arith.constant 0 : i32
    return %c0_i32, %c0_i32_0 : i32, i32
  }
  func.func @transform_2(%arg0: i32) -> (i32, i32) {
    %c0_i32 = arith.constant 0 : i32
    %c0_i32_0 = arith.constant 0 : i32
    %c0_i32_1 = arith.constant 0 : i32
    return %c0_i32, %c0_i32_0 : i32, i32
  }
  func.func @transform_3(%arg0: i32) -> (i32, i32, i32) {
    %c0_i32 = arith.constant 0 : i32
    %c0_i32_0 = arith.constant 0 : i32
    %c0_i32_1 = arith.constant 0 : i32
    %c0_i32_2 = arith.constant 0 : i32
    return %c0_i32, %c0_i32_0, %c0_i32_1 : i32, i32, i32
  }
  func.func @transform_4(%arg0: i32) -> (i32, i32) {
    %c0_i32 = arith.constant 0 : i32
    %c0_i32_0 = arith.constant 0 : i32
    %c0_i32_1 = arith.constant 0 : i32
    return %c0_i32, %c0_i32_0 : i32, i32
  }
  func.func @transform_5(%arg0: i32) -> (i32, i32) {
    %c0_i32 = arith.constant 0 : i32
    %c0_i32_0 = arith.constant 0 : i32
    return %arg0, %c0_i32 : i32, i32
  }
}

</mosaic_0001>

<llo_original>
// kernel: tpu_custom_call.1
$region0: #{tpu_custom_call.1}
  #allocation0 [shape = 'u32[]', space=smem, size = 0x4, offset = 0x4, fixed_abs, tag = 'smem constant byte address 0x4 - core index']
  #allocation1 [shape = 'u32[144,128]{1,0:T(1,128)}', space=vmem, size = 0x12000, scoped, tag = 'internal scratch']
  #allocation2 [shape = 'f32[4,2,128]{2,1,0:T(2,128)}', space=vmem, size = 0x1000, scoped, tag = 'scratch operand']
  #allocation3 [shape = 'f32[4,2,128]{2,1,0:T(2,128)}', space=vmem, size = 0x1000, scoped, tag = 'scratch operand']
  %s0 = inlined_call_operand.hbm [shape: f32[2,128], index: 0, kind: input, shape index: {}]
  %s1 = inlined_call_operand.hbm [shape: f32[128,256], index: 1, kind: input, shape index: {}]
  %s2 = inlined_call_operand.vmem [shape: f32[1,128], index: 2, kind: input, shape index: {}]
  %s3 = inlined_call_operand.hbm [shape: f32[4,128,128], index: 3, kind: input, shape index: {}]
  %s4 = inlined_call_operand.vmem [shape: f32[4,128], index: 4, kind: input, shape index: {}]
  %s5 = inlined_call_operand.hbm [shape: f32[2,128], index: 5, kind: output, shape index: {}]
  %s6 = sld [smem:[#allocation0]]
  $region63: #{tpu_custom_call.1} parent=0
    _
  %s8 = ssub.s32 1, %s6
  %s9 = scalar_select 0, %s8, %s6
  $region1: #{tpu_custom_call.1} parent=0
    #allocation4 [shape = 'u8[1024]{0}', space=vmem, size = 0x400, scoped, tag = 'input window, operand 0, single buffered']
    #allocation5 [shape = 's32[1]{0}', space=sflag, size = 0x4, scoped, tag = 'scoped memory for tpu_custom_call.1']
    #allocation6 [shape = 's32[1]{0}', space=sflag, size = 0x4, scoped, tag = 'scoped memory for tpu_custom_call.1']
    #allocation7 [shape = 'u8[131072]{0}', space=vmem, size = 0x20000, scoped, tag = 'input window, operand 1, single buffered']
    #allocation8 [shape = 's32[1]{0}', space=sflag, size = 0x4, scoped, tag = 'scoped memory for tpu_custom_call.1']
    #allocation9 [shape = 'u8[262144]{0}', space=vmem, size = 0x40000, scoped, tag = 'input window, operand 3, single buffered']
    #allocation10 [shape = 'u8[1024]{0}', space=vmem, size = 0x400, scoped, tag = 'output window, operand 0, single buffered']
    %10 = vsyncpa [#allocation5], 0
    %11 = vsyncpa [#allocation8], 0
    %12 = vsyncpa [#allocation6], 0
    // Predicated region
    $region2: #{tpu_custom_call.1} parent=1 // pred_check
      _
    $region3: #{tpu_custom_call.1} parent=1 // pred_check_branch
      %14 = sbr.rel (0) target = $region5
    $region4: #{tpu_custom_call.1} parent=1 // pred_region
      %s16 = ssub.s32 32, 32
      %17 = vsyncadd [#allocation5], %s16
      %s19 = sshll.u32 [#allocation4], 4
      %s20 = int_to_ptr.vmem [resolvable:$true] %s19
      %22 = dma.hbm_to_vmem [thread:$0]  %s0, 32, %s20, [#allocation5]
    $region5: #{tpu_custom_call.1} parent=1 // pred_fallthru
      _
    // Predicated region
    $region6: #{tpu_custom_call.1} parent=1 // pred_check
      _
    $region7: #{tpu_custom_call.1} parent=1 // pred_check_branch
      %24 = sbr.rel (0) target = $region9
    $region8: #{tpu_custom_call.1} parent=1 // pred_region
      %s26 = ssub.s32 4096, 4096
      %27 = vsyncadd [#allocation8], %s26
      %s28 = sshll.u32 [#allocation7], 4
      %s29 = int_to_ptr.vmem [resolvable:$true] %s28
      %34 = dma.hbm_to_vmem [thread:$0]  %s1, 4096, %s29, [#allocation8], 256, 256, 16
    $region9: #{tpu_custom_call.1} parent=1 // pred_fallthru
      _
    // Predicated region
    $region10: #{tpu_custom_call.1} parent=1 // pred_check
      _
    $region11: #{tpu_custom_call.1} parent=1 // pred_check_branch
      %36 = sbr.rel (0) target = $region13
    $region12: #{tpu_custom_call.1} parent=1 // pred_region
      _
    $region13: #{tpu_custom_call.1} parent=1 // pred_fallthru
      _
    // Predicated region
    $region14: #{tpu_custom_call.1} parent=1 // pred_check
      _
    $region15: #{tpu_custom_call.1} parent=1 // pred_check_branch
      %38 = sbr.rel (0) target = $region17
    $region16: #{tpu_custom_call.1} parent=1 // pred_region
      %s40 = ssub.s32 8192, 8192
      %41 = vsyncadd [#allocation8], %s40
      %s42 = sshll.u32 [#allocation9], 4
      %s43 = int_to_ptr.vmem [resolvable:$true] %s42
      %48 = dma.hbm_to_vmem [thread:$0]  %s3, 8192, %s43, [#allocation8], 128, 128, 8
    $region17: #{tpu_custom_call.1} parent=1 // pred_fallthru
      _
    // Predicated region
    $region18: #{tpu_custom_call.1} parent=1 // pred_check
      _
    $region19: #{tpu_custom_call.1} parent=1 // pred_check_branch
      %50 = sbr.rel (0) target = $region21
    $region20: #{tpu_custom_call.1} parent=1 // pred_region
      _
    $region21: #{tpu_custom_call.1} parent=1 // pred_fallthru
      _
    // Predicated region
    $region22: #{tpu_custom_call.1} parent=1 // pred_check
      _
    $region23: #{tpu_custom_call.1} parent=1 // pred_check_branch
      %52 = sbr.rel (0) target = $region25
    $region24: #{tpu_custom_call.1} parent=1 // pred_region
      %53 = dma.done [#allocation5], 32
    $region25: #{tpu_custom_call.1} parent=1 // pred_fallthru
      _
    // Predicated region
    $region26: #{tpu_custom_call.1} parent=1 // pred_check
      _
    $region27: #{tpu_custom_call.1} parent=1 // pred_check_branch
      %55 = sbr.rel (0) target = $region29
    $region28: #{tpu_custom_call.1} parent=1 // pred_region
      %56 = dma.done [#allocation8], 4096
    $region29: #{tpu_custom_call.1} parent=1 // pred_fallthru
      _
    // Predicated region
    $region30: #{tpu_custom_call.1} parent=1 // pred_check
      _
    $region31: #{tpu_custom_call.1} parent=1 // pred_check_branch
      %58 = sbr.rel (0) target = $region33
    $region32: #{tpu_custom_call.1} parent=1 // pred_region
      %59 = dma.done [#allocation8], 8192
    $region33: #{tpu_custom_call.1} parent=1 // pred_fallthru
      _
    %60 = vst [vmem:[#allocation2] sm:$0x3] 0.0
    %61 = vst [vmem:[#allocation2 + $0x2] sm:$0x3] 0.0
    %62 = vst [vmem:[#allocation2 + $0x4] sm:$0x3] 0.0
    %63 = vst [vmem:[#allocation2 + $0x6] sm:$0x3] 0.0
    %64 = vst [vmem:[#allocation3] sm:$0x3] 0.0
    %65 = vst [vmem:[#allocation3 + $0x2] sm:$0x3] 0.0
    %66 = vst [vmem:[#allocation3 + $0x4] sm:$0x3] 0.0
    %67 = vst [vmem:[#allocation3 + $0x6] sm:$0x3] 0.0
    %v68 = vld [vmem:[#allocation7] sm:$0xff]
    %v69 = vld [vmem:[#allocation7 + $0x8] sm:$0xff]
    %v70 = vld [vmem:[#allocation7 + $0x10] sm:$0xff]
    %v71 = vld [vmem:[#allocation7 + $0x18] sm:$0xff]
    %v72 = vld [vmem:[#allocation7 + $0x20] sm:$0xff]
    %v73 = vld [vmem:[#allocation7 + $0x28] sm:$0xff]
    %v74 = vld [vmem:[#allocation7 + $0x30] sm:$0xff]
    %v75 = vld [vmem:[#allocation7 + $0x38] sm:$0xff]
    %v76 = vld [vmem:[#allocation7 + $0x40] sm:$0xff]
    %v77 = vld [vmem:[#allocation7 + $0x48] sm:$0xff]
    %v78 = vld [vmem:[#allocation7 + $0x50] sm:$0xff]
    %v79 = vld [vmem:[#allocation7 + $0x58] sm:$0xff]
    %v80 = vld [vmem:[#allocation7 + $0x60] sm:$0xff]
    %v81 = vld [vmem:[#allocation7 + $0x68] sm:$0xff]
    %v82 = vld [vmem:[#allocation7 + $0x70] sm:$0xff]
    %v83 = vld [vmem:[#allocation7 + $0x78] sm:$0xff]
    %v84 = vld [vmem:[#allocation7 + $0x80] sm:$0xff]
    %v85 = vld [vmem:[#allocation7 + $0x88] sm:$0xff]
    %v86 = vld [vmem:[#allocation7 + $0x90] sm:$0xff]
    %v87 = vld [vmem:[#allocation7 + $0x98] sm:$0xff]
    %v88 = vld [vmem:[#allocation7 + $0xa0] sm:$0xff]
    %v89 = vld [vmem:[#allocation7 + $0xa8] sm:$0xff]
    %v90 = vld [vmem:[#allocation7 + $0xb0] sm:$0xff]
    %v91 = vld [vmem:[#allocation7 + $0xb8] sm:$0xff]
    %v92 = vld [vmem:[#allocation7 + $0xc0] sm:$0xff]
    %v93 = vld [vmem:[#allocation7 + $0xc8] sm:$0xff]
    %v94 = vld [vmem:[#allocation7 + $0xd0] sm:$0xff]
    %v95 = vld [vmem:[#allocation7 + $0xd8] sm:$0xff]
    %v96 = vld [vmem:[#allocation7 + $0xe0] sm:$0xff]
    %v97 = vld [vmem:[#allocation7 + $0xe8] sm:$0xff]
    %v98 = vld [vmem:[#allocation7 + $0xf0] sm:$0xff]
    %v99 = vld [vmem:[#allocation7 + $0xf8] sm:$0xff]
    %v100 = vlaneseq
    %v101 = vand.u32 %v100, 127
    %vm102 = vcmp.eq.s32.totalorder %v101, 8
    %v103 = vld [vmem:[#allocation4] sm:$0x3]
    %v104 = vld [vmem:[%s2] sm:$0x1]
    %v106 = vlaneseq
    %v107 = vshrl.u32 %v106, 7
    %v108 = vsub.s32 0, %v107
    %v109 = vrot.slane %v104, %v108
    loop: start=0, step=1, limit=4
    $region34: #{tpu_custom_call.1} parent=1 // loop_pre_header
      _
    $region35: #{tpu_custom_call.1} parent=1 // loop_header
      %s112 = sphi 0, %s116
      %p113 = scmp.ge.s32.totalorder %s112, 4
      %v117 = vphi %v103, %v160
      %v118 = vphi %v109, %v439
      %v119 = vphi 4294967295, %v433
    $region36: #{tpu_custom_call.1} parent=1 // loop_header_branch
      %115 = sbr.rel (%p113) target = $region40
    $region37: #{tpu_custom_call.1} parent=1 // loop_body
      %vm120 = vcmask 1041408
      %v121 = vsel %vm120, %v118, -inf
      %122 = vmax.xlane.f32.xlu0 %v121
      %v123 = vpop.xlane.xlu0 %122
      %v124 = vsub.f32 %v118, %v123
      %v125 = vmul.f32 %v124, 1.442695
      %v126 = vpow.pop %v125
      %v127 = vsel %vm120, %v126, 0.0
      %128 = vadd.xlane.f32.xlu0 %v127
      %v129 = vpop.xlane.xlu0 %128
      %v130 = vrcp.pop %v129
      %v131 = vmul.f32 %v126, %v130
      %v132 = vadd.f32 %v131, 1e-20
      %v133 = vrcp.pop %v132
      %v134 = vmul.f32 %v117, %v133
      %v135 = vsel %vm120, %v134, inf
      %136 = vmin.xlane.f32.xlu0 %v135
      %v137 = vpop.xlane.xlu0 %136
      %vm138 = vcmp.eq.f32.partialorder %v134, %v137
      %v139 = vsel %vm138, %v101, 128
      %v140 = vsel %vm120, %v139, 2147483647
      %v141 = vand.u32 %v140, 65535
      %v142 = vshra.s32 %v140, 16
      %v143 = vcvt.s32.f32 %v141
      %v144 = vcvt.s32.f32 %v142
      %145 = vmin.xlane.f32.xlu0 %v144
      %v146 = vpop.xlane.xlu0 %145
      %vm147 = vcmp.eq.f32.partialorder %v144, %v146
      %v148 = vsel %vm147, %v143, inf
      %149 = vmin.xlane.f32.xlu0 %v148
      %v150 = vpop.xlane.xlu0 %149
      %v151 = vcvt.f32.s32 %v150
      %v152 = vcvt.f32.s32 %v146
      %v153 = vshll.u32 %v152, 16
      %v154 = vadd.s32 %v153, %v151
      %vm155 = vcmp.eq.s32.totalorder %v101, %v154
      %v156 = vsel %vm155, 1, 0
      %v157 = vcvt.s32.f32 %v156
      %v158 = vmul.f32 %v137, %v131
      %v159 = vsub.f32 %v117, %v158
      %v160 = vsel %vm155, %v137, %v159
      %161 = vmatprep.subr.mxu0 %v69
      %162 = vmatpush1.msra.mxu0 %v68
      %163 = vmatprep.subr.mxu0 %v71
      %164 = vmatpush1.msra.mxu0 %v70
      %165 = vmatprep.subr.mxu0 %v73
      %166 = vmatpush1.msra.mxu0 %v72
      %167 = vmatprep.subr.mxu0 %v75
      %168 = vmatpush1.msra.mxu0 %v74
      %169 = vmatprep.subr.mxu0 %v77
      %170 = vmatpush1.msra.mxu0 %v76
      %171 = vmatprep.subr.mxu0 %v79
      %172 = vmatpush1.msra.mxu0 %v78
      %173 = vmatprep.subr.mxu0 %v81
      %174 = vmatpush1.msra.mxu0 %v80
      %175 = vmatprep.subr.mxu0 %v83
      %176 = vmatpush1.msra.mxu0 %v82
      %177 = vmatprep.subr.mxu0 %v85
      %178 = vmatpush1.msra.mxu0 %v84
      %179 = vmatprep.subr.mxu0 %v87
      %180 = vmatpush1.msra.mxu0 %v86
      %181 = vmatprep.subr.mxu0 %v89
      %182 = vmatpush1.msra.mxu0 %v88
      %183 = vmatprep.subr.mxu0 %v91
      %184 = vmatpush1.msra.mxu0 %v90
      %185 = vmatprep.subr.mxu0 %v93
      %186 = vmatpush1.msra.mxu0 %v92
      %187 = vmatprep.subr.mxu0 %v95
      %188 = vmatpush1.msra.mxu0 %v94
      %189 = vmatprep.subr.mxu0 %v97
      %190 = vmatpush1.msra.mxu0 %v96
      %191 = vmatprep.subr.mxu0 %v99
      %192 = vmatpush1.msra.mxu0 %v98
      %193 = vmatprep.subr.mxu0 0.0
      %194 = vmatpush1.msra.mxu0 0.0
      %195 = vmatprep.subr.mxu0 0.0
      %196 = vmatpush1.msra.mxu0 0.0
      %197 = vmatprep.subr.mxu0 0.0
      %198 = vmatpush1.msra.mxu0 0.0
      %199 = vmatprep.subr.mxu0 0.0
      %200 = vmatpush1.msra.mxu0 0.0
      %201 = vmatprep.subr.mxu0 0.0
      %202 = vmatpush1.msra.mxu0 0.0
      %203 = vmatprep.subr.mxu0 0.0
      %204 = vmatpush1.msra.mxu0 0.0
      %205 = vmatprep.subr.mxu0 0.0
      %206 = vmatpush1.msra.mxu0 0.0
      %207 = vmatprep.subr.mxu0 0.0
      %208 = vmatpush1.msra.mxu0 0.0
      %209 = vmatprep.subr.mxu0 0.0
      %210 = vmatpush1.msra.mxu0 0.0
      %211 = vmatprep.subr.mxu0 0.0
      %212 = vmatpush1.msra.mxu0 0.0
      %213 = vmatprep.subr.mxu0 0.0
      %214 = vmatpush1.msra.mxu0 0.0
      %215 = vmatprep.subr.mxu0 0.0
      %216 = vmatpush1.msra.mxu0 0.0
      %217 = vmatprep.subr.mxu0 0.0
      %218 = vmatpush1.msra.mxu0 0.0
      %219 = vmatprep.subr.mxu0 0.0
      %220 = vmatpush1.msra.mxu0 0.0
      %221 = vmatprep.subr.mxu0 0.0
      %222 = vmatpush1.msra.mxu0 0.0
      %223 = vmatprep.subr.mxu0 0.0
      %224 = vmatpush1.msra.mxu0 0.0
      %225 = vmatprep.mubr.f32.mxu0 0.0
      %226 = vmatmul.mubr.f32.gmra.mrb[0].mxu0 %v131
      %v227 = vpop.f32.mrb[0].mxu0
      %v228 = vadd.f32 0.0, %v227
      %v229 = vpop.f32.mrb[0].mxu0
      %v230 = vadd.f32 0.0, %v229
      %231 = vdwg.mxu0
      %232 = vmatprep.subr.mxu0 %v69
      %233 = vmatpush1.msra.mxu0 %v68
      %234 = vmatprep.subr.mxu0 %v71
      %235 = vmatpush1.msra.mxu0 %v70
      %236 = vmatprep.subr.mxu0 %v73
      %237 = vmatpush1.msra.mxu0 %v72
      %238 = vmatprep.subr.mxu0 %v75
      %239 = vmatpush1.msra.mxu0 %v74
      %240 = vmatprep.subr.mxu0 %v77
      %241 = vmatpush1.msra.mxu0 %v76
      %242 = vmatprep.subr.mxu0 %v79
      %243 = vmatpush1.msra.mxu0 %v78
      %244 = vmatprep.subr.mxu0 %v81
      %245 = vmatpush1.msra.mxu0 %v80
      %246 = vmatprep.subr.mxu0 %v83
      %247 = vmatpush1.msra.mxu0 %v82
      %248 = vmatprep.subr.mxu0 %v85
      %249 = vmatpush1.msra.mxu0 %v84
      %250 = vmatprep.subr.mxu0 %v87
      %251 = vmatpush1.msra.mxu0 %v86
      %252 = vmatprep.subr.mxu0 %v89
      %253 = vmatpush1.msra.mxu0 %v88
      %254 = vmatprep.subr.mxu0 %v91
      %255 = vmatpush1.msra.mxu0 %v90
      %256 = vmatprep.subr.mxu0 %v93
      %257 = vmatpush1.msra.mxu0 %v92
      %258 = vmatprep.subr.mxu0 %v95
      %259 = vmatpush1.msra.mxu0 %v94
      %260 = vmatprep.subr.mxu0 %v97
      %261 = vmatpush1.msra.mxu0 %v96
      %262 = vmatprep.subr.mxu0 %v99
      %263 = vmatpush1.msra.mxu0 %v98
      %264 = vmatprep.subr.mxu0 0.0
      %265 = vmatpush1.msra.mxu0 0.0
      %266 = vmatprep.subr.mxu0 0.0
      %267 = vmatpush1.msra.mxu0 0.0
      %268 = vmatprep.subr.mxu0 0.0
      %269 = vmatpush1.msra.mxu0 0.0
      %270 = vmatprep.subr.mxu0 0.0
      %271 = vmatpush1.msra.mxu0 0.0
      %272 = vmatprep.subr.mxu0 0.0
      %273 = vmatpush1.msra.mxu0 0.0
      %274 = vmatprep.subr.mxu0 0.0
      %275 = vmatpush1.msra.mxu0 0.0
      %276 = vmatprep.subr.mxu0 0.0
      %277 = vmatpush1.msra.mxu0 0.0
      %278 = vmatprep.subr.mxu0 0.0
      %279 = vmatpush1.msra.mxu0 0.0
      %280 = vmatprep.subr.mxu0 0.0
      %281 = vmatpush1.msra.mxu0 0.0
      %282 = vmatprep.subr.mxu0 0.0
      %283 = vmatpush1.msra.mxu0 0.0
      %284 = vmatprep.subr.mxu0 0.0
      %285 = vmatpush1.msra.mxu0 0.0
      %286 = vmatprep.subr.mxu0 0.0
      %287 = vmatpush1.msra.mxu0 0.0
      %288 = vmatprep.subr.mxu0 0.0
      %289 = vmatpush1.msra.mxu0 0.0
      %290 = vmatprep.subr.mxu0 0.0
      %291 = vmatpush1.msra.mxu0 0.0
      %292 = vmatprep.subr.mxu0 0.0
      %293 = vmatpush1.msra.mxu0 0.0
      %294 = vmatprep.subr.mxu0 0.0
      %295 = vmatpush1.msra.mxu0 0.0
      %296 = vmatprep.mubr.f32.mxu0 0.0
      %297 = vmatmul.mubr.f32.gmra.mrb[0].mxu0 %v157
      %v298 = vpop.f32.mrb[0].mxu0
      %v299 = vadd.f32 0.0, %v298
      %v300 = vpop.f32.mrb[0].mxu0
      %v301 = vadd.f32 0.0, %v300
      %302 = vdwg.mxu0
      loop: start=0, step=1, limit=4
      $region41: #{tpu_custom_call.1} parent=37 // loop_pre_header
        _
      $region42: #{tpu_custom_call.1} parent=37 // loop_header
        %s304 = sphi 0, %s308
        %p305 = scmp.ge.s32.totalorder %s304, 4
        %v309 = vphi 0.0, %v321
        %v310 = vphi 0.0, %v325
      $region43: #{tpu_custom_call.1} parent=37 // loop_header_branch
        %307 = sbr.rel (%p305) target = $region47
      $region44: #{tpu_custom_call.1} parent=37 // loop_body
        %v311 = vstv %s304
        %vm312 = vcmp.eq.s32.totalorder %v119, %v311
        %v313 = vsel %vm312, %v131, 0.0
        %v314 = vsel %vm120, %v313, 0.0
        %315 = vadd.xlane.f32.xlu0 %v314
        %v316 = vpop.xlane.xlu0 %315
        %s317 = smul.u32 %s304, 2
        %s318 = scalar_lea.vmem [#allocation2], %s317
        %v319 = vld [vmem:[%s318] sm:$0x3]
        %v320 = vmul.f32 %v316, %v319
        %v321 = vadd.f32 %v309, %v320
        %s322 = scalar_lea.vmem [#allocation3], %s317
        %v323 = vld [vmem:[%s322] sm:$0x3]
        %v324 = vmul.f32 %v316, %v323
        %v325 = vadd.f32 %v310, %v324
      $region45: #{tpu_custom_call.1} parent=37 // loop_footer
        %s308 = sadd.s32 1, %s304
      $region46: #{tpu_custom_call.1} parent=37 // loop_footer_branch
        %303 = sbr.rel target = $region42
      $region47: #{tpu_custom_call.1} parent=37 // loop_exit
        _
      %v326 = vadd.f32 %v228, %v309
      %v327 = vadd.f32 %v230, %v310
      %s328 = smul.u32 %s112, 128
      %s329 = scalar_lea.vmem [#allocation9], %s328
      %v330 = vld [vmem:[%s329] sm:$0xff]
      %v331 = vld [vmem:[%s329 + $0x8] sm:$0xff]
      %v332 = vld [vmem:[%s329 + $0x10] sm:$0xff]
      %v333 = vld [vmem:[%s329 + $0x18] sm:$0xff]
      %v334 = vld [vmem:[%s329 + $0x20] sm:$0xff]
      %v335 = vld [vmem:[%s329 + $0x28] sm:$0xff]
      %v336 = vld [vmem:[%s329 + $0x30] sm:$0xff]
      %v337 = vld [vmem:[%s329 + $0x38] sm:$0xff]
      %v338 = vld [vmem:[%s329 + $0x40] sm:$0xff]
      %v339 = vld [vmem:[%s329 + $0x48] sm:$0xff]
      %v340 = vld [vmem:[%s329 + $0x50] sm:$0xff]
      %v341 = vld [vmem:[%s329 + $0x58] sm:$0xff]
      %v342 = vld [vmem:[%s329 + $0x60] sm:$0xff]
      %v343 = vld [vmem:[%s329 + $0x68] sm:$0xff]
      %v344 = vld [vmem:[%s329 + $0x70] sm:$0xff]
      %v345 = vld [vmem:[%s329 + $0x78] sm:$0xff]
      %346 = vmatprep.subr.mxu0 0.0
      %347 = vmatpush1.msra.mxu0 %v330
      %348 = vmatprep.subr.mxu0 0.0
      %349 = vmatpush1.msra.mxu0 %v331
      %350 = vmatprep.subr.mxu0 0.0
      %351 = vmatpush1.msra.mxu0 %v332
      %352 = vmatprep.subr.mxu0 0.0
      %353 = vmatpush1.msra.mxu0 %v333
      %354 = vmatprep.subr.mxu0 0.0
      %355 = vmatpush1.msra.mxu0 %v334
      %356 = vmatprep.subr.mxu0 0.0
      %357 = vmatpush1.msra.mxu0 %v335
      %358 = vmatprep.subr.mxu0 0.0
      %359 = vmatpush1.msra.mxu0 %v336
      %360 = vmatprep.subr.mxu0 0.0
      %361 = vmatpush1.msra.mxu0 %v337
      %362 = vmatprep.subr.mxu0 0.0
      %363 = vmatpush1.msra.mxu0 %v338
      %364 = vmatprep.subr.mxu0 0.0
      %365 = vmatpush1.msra.mxu0 %v339
      %366 = vmatprep.subr.mxu0 0.0
      %367 = vmatpush1.msra.mxu0 %v340
      %368 = vmatprep.subr.mxu0 0.0
      %369 = vmatpush1.msra.mxu0 %v341
      %370 = vmatprep.subr.mxu0 0.0
      %371 = vmatpush1.msra.mxu0 %v342
      %372 = vmatprep.subr.mxu0 0.0
      %373 = vmatpush1.msra.mxu0 %v343
      %374 = vmatprep.subr.mxu0 0.0
      %375 = vmatpush1.msra.mxu0 %v344
      %376 = vmatprep.subr.mxu0 0.0
      %377 = vmatpush1.msra.mxu0 %v345
      %378 = vmatprep.subr.mxu0 0.0
      %379 = vmatpush1.msra.mxu0 0.0
      %380 = vmatprep.subr.mxu0 0.0
      %381 = vmatpush1.msra.mxu0 0.0
      %382 = vmatprep.subr.mxu0 0.0
      %383 = vmatpush1.msra.mxu0 0.0
      %384 = vmatprep.subr.mxu0 0.0
      %385 = vmatpush1.msra.mxu0 0.0
      %386 = vmatprep.subr.mxu0 0.0
      %387 = vmatpush1.msra.mxu0 0.0
      %388 = vmatprep.subr.mxu0 0.0
      %389 = vmatpush1.msra.mxu0 0.0
      %390 = vmatprep.subr.mxu0 0.0
      %391 = vmatpush1.msra.mxu0 0.0
      %392 = vmatprep.subr.mxu0 0.0
      %393 = vmatpush1.msra.mxu0 0.0
      %394 = vmatprep.subr.mxu0 0.0
      %395 = vmatpush1.msra.mxu0 0.0
      %396 = vmatprep.subr.mxu0 0.0
      %397 = vmatpush1.msra.mxu0 0.0
      %398 = vmatprep.subr.mxu0 0.0
      %399 = vmatpush1.msra.mxu0 0.0
      %400 = vmatprep.subr.mxu0 0.0
      %401 = vmatpush1.msra.mxu0 0.0
      %402 = vmatprep.subr.mxu0 0.0
      %403 = vmatpush1.msra.mxu0 0.0
      %404 = vmatprep.subr.mxu0 0.0
      %405 = vmatpush1.msra.mxu0 0.0
      %406 = vmatprep.subr.mxu0 0.0
      %407 = vmatpush1.msra.mxu0 0.0
      %408 = vmatprep.subr.mxu0 0.0
      %409 = vmatpush1.msra.mxu0 0.0
      %410 = vmatprep.mubr.f32.mxu0 0.0
      %411 = vmatmul.mubr.f32.gmra.mrb[0].mxu0 %v326
      %v412 = vpop.f32.mrb[0].mxu0
      %v413 = vadd.f32 0.0, %v412
      %v414 = vpop.f32.mrb[0].mxu0
      %415 = vdwg.mxu0
      %v416 = vadd.f32 %v327, %v413
      %s417 = scalar_lea.vmem %s4, %s112
      %v418 = vld [vmem:[%s417] sm:$0x1]
      %v419 = vlaneseq
      %v420 = vshrl.u32 %v419, 7
      %v421 = vsub.s32 0, %v420
      %v422 = vrot.slane %v418, %v421
      %v423 = vadd.f32 %v416, %v422
      %v424 = vsub.f32 %v326, %v299
      %s425 = smul.u32 %s112, 2
      %s426 = scalar_lea.vmem [#allocation2], %s425
      %427 = vst [vmem:[%s426] sm:$0x3] %v424
      %v428 = vsub.f32 %v423, %v301
      %v429 = vsel %vm102, 0.0, %v428
      %s430 = scalar_lea.vmem [#allocation3], %s425
      %431 = vst [vmem:[%s430] sm:$0x3] %v429
      %v432 = vstv %s112
      %v433 = vsel %vm155, %v432, %v119
      %435 = vset.pattern.permute.xlu0 8
      %436 = vperm.xlu0 %435, %v423
      %v437 = vpop.permute.xlu0 %436
      %v439 = vsel %vm155, %v437, %v118
    $region38: #{tpu_custom_call.1} parent=1 // loop_footer
      %s116 = sadd.s32 1, %s112
    $region39: #{tpu_custom_call.1} parent=1 // loop_footer_branch
      %111 = sbr.rel target = $region35
    $region40: #{tpu_custom_call.1} parent=1 // loop_exit
      _
    %440 = vmatprep.subr.mxu0 %v69
    %441 = vmatpush1.msra.mxu0 %v68
    %442 = vmatprep.subr.mxu0 %v71
    %443 = vmatpush1.msra.mxu0 %v70
    %444 = vmatprep.subr.mxu0 %v73
    %445 = vmatpush1.msra.mxu0 %v72
    %446 = vmatprep.subr.mxu0 %v75
    %447 = vmatpush1.msra.mxu0 %v74
    %448 = vmatprep.subr.mxu0 %v77
    %449 = vmatpush1.msra.mxu0 %v76
    %450 = vmatprep.subr.mxu0 %v79
    %451 = vmatpush1.msra.mxu0 %v78
    %452 = vmatprep.subr.mxu0 %v81
    %453 = vmatpush1.msra.mxu0 %v80
    %454 = vmatprep.subr.mxu0 %v83
    %455 = vmatpush1.msra.mxu0 %v82
    %456 = vmatprep.subr.mxu0 %v85
    %457 = vmatpush1.msra.mxu0 %v84
    %458 = vmatprep.subr.mxu0 %v87
    %459 = vmatpush1.msra.mxu0 %v86
    %460 = vmatprep.subr.mxu0 %v89
    %461 = vmatpush1.msra.mxu0 %v88
    %462 = vmatprep.subr.mxu0 %v91
    %463 = vmatpush1.msra.mxu0 %v90
    %464 = vmatprep.subr.mxu0 %v93
    %465 = vmatpush1.msra.mxu0 %v92
    %466 = vmatprep.subr.mxu0 %v95
    %467 = vmatpush1.msra.mxu0 %v94
    %468 = vmatprep.subr.mxu0 %v97
    %469 = vmatpush1.msra.mxu0 %v96
    %470 = vmatprep.subr.mxu0 %v99
    %471 = vmatpush1.msra.mxu0 %v98
    %472 = vmatprep.subr.mxu0 0.0
    %473 = vmatpush1.msra.mxu0 0.0
    %474 = vmatprep.subr.mxu0 0.0
    %475 = vmatpush1.msra.mxu0 0.0
    %476 = vmatprep.subr.mxu0 0.0
    %477 = vmatpush1.msra.mxu0 0.0
    %478 = vmatprep.subr.mxu0 0.0
    %479 = vmatpush1.msra.mxu0 0.0
    %480 = vmatprep.subr.mxu0 0.0
    %481 = vmatpush1.msra.mxu0 0.0
    %482 = vmatprep.subr.mxu0 0.0
    %483 = vmatpush1.msra.mxu0 0.0
    %484 = vmatprep.subr.mxu0 0.0
    %485 = vmatpush1.msra.mxu0 0.0
    %486 = vmatprep.subr.mxu0 0.0
    %487 = vmatpush1.msra.mxu0 0.0
    %488 = vmatprep.subr.mxu0 0.0
    %489 = vmatpush1.msra.mxu0 0.0
    %490 = vmatprep.subr.mxu0 0.0
    %491 = vmatpush1.msra.mxu0 0.0
    %492 = vmatprep.subr.mxu0 0.0
    %493 = vmatpush1.msra.mxu0 0.0
    %494 = vmatprep.subr.mxu0 0.0
    %495 = vmatpush1.msra.mxu0 0.0
    %496 = vmatprep.subr.mxu0 0.0
    %497 = vmatpush1.msra.mxu0 0.0
    %498 = vmatprep.subr.mxu0 0.0
    %499 = vmatpush1.msra.mxu0 0.0
    %500 = vmatprep.subr.mxu0 0.0
    %501 = vmatpush1.msra.mxu0 0.0
    %502 = vmatprep.subr.mxu0 0.0
    %503 = vmatpush1.msra.mxu0 0.0
    %504 = vmatprep.mubr.f32.mxu0 0.0
    %505 = vmatmul.mubr.f32.gmra.mrb[0].mxu0 %v117
    %v506 = vpop.f32.mrb[0].mxu0
    %v507 = vpop.f32.mrb[0].mxu0
    %v508 = vadd.f32 0.0, %v507
    %509 = vdwg.mxu0
    loop: start=0, step=1, limit=4
    $region48: #{tpu_custom_call.1} parent=1 // loop_pre_header
      _
    $region49: #{tpu_custom_call.1} parent=1 // loop_header
      %s511 = sphi 0, %s515
      %p512 = scmp.ge.s32.totalorder %s511, 4
      %v516 = vphi %v508, %v528
    $region50: #{tpu_custom_call.1} parent=1 // loop_header_branch
      %514 = sbr.rel (%p512) target = $region54
    $region51: #{tpu_custom_call.1} parent=1 // loop_body
      %v517 = vstv %s511
      %vm518 = vcmp.eq.s32.totalorder %v119, %v517
      %v519 = vsel %vm518, %v117, 0.0
      %vm520 = vcmask 1041408
      %v521 = vsel %vm520, %v519, 0.0
      %522 = vadd.xlane.f32.xlu0 %v521
      %v523 = vpop.xlane.xlu0 %522
      %s524 = smul.u32 %s511, 2
      %s525 = scalar_lea.vmem [#allocation3], %s524
      %v526 = vld [vmem:[%s525] sm:$0x3]
      %v527 = vmul.f32 %v523, %v526
      %v528 = vadd.f32 %v516, %v527
    $region52: #{tpu_custom_call.1} parent=1 // loop_footer
      %s515 = sadd.s32 1, %s511
    $region53: #{tpu_custom_call.1} parent=1 // loop_footer_branch
      %510 = sbr.rel target = $region49
    $region54: #{tpu_custom_call.1} parent=1 // loop_exit
      _
    %529 = vst [vmem:[#allocation10] sm:$0x3] %v516
    // Predicated region
    $region55: #{tpu_custom_call.1} parent=1 // pred_check
      _
    $region56: #{tpu_custom_call.1} parent=1 // pred_check_branch
      %531 = sbr.rel (0) target = $region58
    $region57: #{tpu_custom_call.1} parent=1 // pred_region
      %s533 = ssub.s32 32, 32
      %534 = vsyncadd [#allocation6], %s533
      %s536 = sshll.u32 [#allocation10], 4
      %s537 = int_to_ptr.vmem [resolvable:$true] %s536
      %539 = dma.vmem_to_hbm [thread:$0]  %s537, 32, %s5, [#allocation6]
    $region58: #{tpu_custom_call.1} parent=1 // pred_fallthru
      _
    // Predicated region
    $region59: #{tpu_custom_call.1} parent=1 // pred_check
      _
    $region60: #{tpu_custom_call.1} parent=1 // pred_check_branch
      %541 = sbr.rel (0) target = $region62
    $region61: #{tpu_custom_call.1} parent=1 // pred_region
      %542 = dma.done [#allocation6], 32
    $region62: #{tpu_custom_call.1} parent=1 // pred_fallthru
      _
    %543 = vsyncpa [#allocation5], 1
    %544 = vsyncpa [#allocation8], 1
    %545 = vsyncpa [#allocation6], 1

</llo_original>
